<compile_context>
chip_gen: v7x
topology: tpu7x:2x2x1
jax: 0.10.0
libtpu: 0.0.40
codegen_flags: <defaults>
</compile_context>

<pallas_src>
import jax
import jax.numpy as jnp
from jax.experimental import pallas as pl
from jax.experimental.pallas import tpu as pltpu

_MIB = 1024 * 1024
_LANE_CANDIDATES = (8192, 4096, 2048, 1024, 512, 256, 128)


def _h_swish_kernel(x_ref, o_ref):
    # y = x * relu6(x + 3) / 6, computed in f32 (one rounding for bf16 inputs).
    x = x_ref[...].astype(jnp.float32)
    y = x * jnp.clip(x + 3.0, 0.0, 6.0) * (1.0 / 6.0)
    o_ref[...] = y.astype(o_ref.dtype)


def _round_up(a: int, b: int) -> int:
    return (a + b - 1) // b * b


def _sublane(dtype) -> int:
    return {4: 8, 2: 16, 1: 32}.get(jnp.dtype(dtype).itemsize, 8)


def _tpu_tuning():
    """Return (block_bytes, vmem_limit_bytes) for the local TPU generation."""
    try:
        kind = jax.devices()[0].device_kind.lower()
    except Exception:
        kind = ""
    if "v7" in kind or "7x" in kind:
        # ~3.2 TB/s HBM: amortize the ~0.35us/step cost with big blocks; raise
        # scoped VMEM above the 32 MiB default (64 MiB physical).
        return 6 * _MIB, 48 * _MIB
    if "v6" in kind or "trillium" in kind:
        return 4 * _MIB, 32 * _MIB
    # v5e / v5p / unknown: 16 MiB default scoped VMEM -> stay conservative.
    return 2 * _MIB, None


def _run_2d(x2d: jax.Array, *, block_bytes: int, vmem_limit) -> jax.Array:
    """Run the elementwise kernel on a (rows, lanes) slab (lanes mult. of 128)."""
    rows, lanes = x2d.shape
    itemsize = jnp.dtype(x2d.dtype).itemsize
    sub = _sublane(x2d.dtype)

    # Byte-budgeted row tile, rounded to the dtype's sublane tile.
    tr = max(sub, (block_bytes // (lanes * itemsize)) // sub * sub)
    # Prefer >=4 grid blocks for large inputs: keeps input DMA of step i+1
    # overlapping output DMA of step i, and gives v7x's two cores >=2 blocks.
    if rows >= 4 * sub:
        tr = min(tr, _round_up(pl.cdiv(rows, 4), sub))
    if tr >= rows:
        tr = rows  # single block == full array dim (always a legal block shape)
    grid = pl.cdiv(rows, tr)  # uneven trailing block handled by the pipeline

    total = rows * lanes
    cost = pl.CostEstimate(
        flops=5 * total,
        transcendentals=0,
        bytes_accessed=2 * total * itemsize,
    )

    return pl.pallas_call(
        _h_swish_kernel,
        out_shape=jax.ShapeDtypeStruct((rows, lanes), x2d.dtype),
        grid_spec=pltpu.PrefetchScalarGridSpec(
            num_scalar_prefetch=0,
            grid=(grid,),
            in_specs=[pl.BlockSpec((tr, lanes), lambda i: (i, 0))],
            out_specs=pl.BlockSpec((tr, lanes), lambda i: (i, 0)),
        ),
        compiler_params=pltpu.CompilerParams(
            dimension_semantics=("parallel",),
            vmem_limit_bytes=vmem_limit,
        ),
        cost_estimate=cost,
    )(x2d)


def h_swish(x: jax.Array) -> jax.Array:
    """Elementwise h_swish via a Pallas TPU kernel (any input shape)."""
    orig_shape = x.shape
    total = x.size
    if total == 0:
        return x
    block_bytes, vmem_limit = _tpu_tuning()

    # Fast path: lane-dense 2D slab with NO padding and NO wrapper copies.
    for lanes in _LANE_CANDIDATES:
        if total % lanes == 0:
            x2d = x.reshape(total // lanes, lanes)
            out2d = _run_2d(x2d, block_bytes=block_bytes, vmem_limit=vmem_limit)
            return out2d.reshape(orig_shape)

    # Fallback (total not a multiple of 128): pad the flat array up to a
    # lane-dense slab. In MobileNetV3 every non-divisible activation is tiny
    # (< ~200 KiB), so the pad/slice copies cost nothing measurable.
    # TODO(synk): for huge non-128-divisible tensors a bulk+tail split would
    # avoid the extra full-tensor HBM copies.
    lanes = 512
    sub = _sublane(x.dtype)
    rows = _round_up(pl.cdiv(total, lanes), sub)
    padded = rows * lanes
    x_flat = jnp.pad(x.reshape(-1), (0, padded - total))
    out2d = _run_2d(x_flat.reshape(rows, lanes),
                    block_bytes=block_bytes, vmem_limit=vmem_limit)
    return out2d.reshape(-1)[:total].reshape(orig_shape)


def _h_swish_ref(x):
    xf = x.astype(jnp.float32)
    return (xf * jnp.clip(xf + 3.0, 0.0, 6.0) * (1.0 / 6.0)).astype(x.dtype)


if __name__ == "__main__":
    key = jax.random.PRNGKey(0)

    # NCHW input consistent with a MobileNetV3 activation map (fast path,
    # single block: total = 2048 divides lane width).
    x = jax.random.normal(key, (2, 4, 16, 16), dtype=jnp.float32) * 4.0
    y = h_swish(x)
    jax.block_until_ready(y)
    assert y.shape == x.shape and y.dtype == x.dtype
    assert jnp.allclose(y, _h_swish_ref(x), atol=1e-5, rtol=1e-5)

    # Larger divisible shape -> multi-block grid with an uneven trailing block.
    x1 = jax.random.normal(jax.random.PRNGKey(2), (2, 16, 28, 28),
                           dtype=jnp.float32) * 3.0
    y1 = h_swish(x1)
    jax.block_until_ready(y1)
    assert jnp.allclose(y1, _h_swish_ref(x1), atol=1e-5, rtol=1e-5)

    # Non-128-divisible total (late-stage H*W=49) + bf16: padded fallback path
    # and the f32-intermediate math.
    x2 = jax.random.normal(jax.random.PRNGKey(1), (2, 8, 7, 7), dtype=jnp.bfloat16)
    y2 = h_swish(x2)
    jax.block_until_ready(y2)
    assert y2.shape == x2.shape and y2.dtype == x2.dtype
    assert jnp.allclose(y2.astype(jnp.float32),
                        _h_swish_ref(x2).astype(jnp.float32),
                        atol=1e-2, rtol=1e-2)

    print("KERNEL_OK")
</pallas_src>

<mosaic_0001>
module attributes {stable_mosaic.version = 11 : i64} {
  func.func @_h_swish_kernel(%arg0: i32, %arg1: memref<1x2048xf32, #tpu.memory_space<vmem>>, %arg2: memref<1x2048xf32, #tpu.memory_space<vmem>>) attributes {dimension_semantics = [#tpu.dimension_semantics<parallel>], iteration_bounds = array<i64: 1>, scalar_prefetch = 0 : i64, scratch_operands = 0 : i64, tpu.core_type = #tpu.core_type<tc>, window_params = [{transform_indices = @transform_0, window_bounds = array<i64: 1, 2048>}, {transform_indices = @transform_1, window_bounds = array<i64: 1, 2048>}]} {
    %c0 = arith.constant 0 : index
    %c0_0 = arith.constant 0 : index
    %0 = vector.load %arg1[%c0, %c0_0] : memref<1x2048xf32, #tpu.memory_space<vmem>>, vector<1x2048xf32>
    %cst = arith.constant 3.000000e+00 : f32
    %1 = vector.broadcast %cst : f32 to vector<1x2048xf32>
    %2 = arith.addf %0, %1 : vector<1x2048xf32>
    %cst_1 = arith.constant 0.000000e+00 : f32
    %cst_2 = arith.constant 6.000000e+00 : f32
    %3 = vector.broadcast %cst_1 : f32 to vector<1x2048xf32>
    %4 = arith.maximumf %3, %2 : vector<1x2048xf32>
    %5 = vector.broadcast %cst_2 : f32 to vector<1x2048xf32>
    %6 = arith.minimumf %5, %4 : vector<1x2048xf32>
    %7 = arith.mulf %0, %6 : vector<1x2048xf32>
    %cst_3 = arith.constant 0.166666672 : f32
    %8 = vector.broadcast %cst_3 : f32 to vector<1x2048xf32>
    %9 = arith.mulf %7, %8 : vector<1x2048xf32>
    %c0_4 = arith.constant 0 : index
    %c0_5 = arith.constant 0 : index
    %10 = vector.load %arg2[%c0_4, %c0_5] : memref<1x2048xf32, #tpu.memory_space<vmem>>, vector<1x2048xf32>
    tpu.vector_store %arg2[%c0_4, %c0_5], %9 {strides = array<i32>} : memref<1x2048xf32, #tpu.memory_space<vmem>>, vector<1x2048xf32>,
    return
  }
  func.func @transform_0(%arg0: i32) -> (i32, i32) {
    %c0_i32 = arith.constant 0 : i32
    %c0_i32_0 = arith.constant 0 : i32
    return %arg0, %c0_i32 : i32, i32
  }
  func.func @transform_1(%arg0: i32) -> (i32, i32) {
    %c0_i32 = arith.constant 0 : i32
    %c0_i32_0 = arith.constant 0 : i32
    return %arg0, %c0_i32 : i32, i32
  }
}

</mosaic_0001>

<llo_original>
// kernel: tpu_custom_call.1
$region0: #{tpu_custom_call.1}
  #allocation0 [shape = 'u32[]', space=smem, size = 0x4, offset = 0x4, fixed_abs, tag = 'smem constant byte address 0x4 - core index']
  #allocation1 [shape = 'u32[144,128]{1,0:T(1,128)}', space=vmem, size = 0x12000, scoped, tag = 'internal scratch']
  %s0 = inlined_call_operand.hbm [shape: f32[1,2048], index: 0, kind: input, shape index: {}]
  %s1 = inlined_call_operand.hbm [shape: f32[1,2048], index: 1, kind: output, shape index: {}]
  %s2 = sld [smem:[#allocation0]]
  $region18: #{tpu_custom_call.1} parent=0
    _
  %s4 = ssub.s32 1, %s2
  %s5 = scalar_select 0, %s4, %s2
  $region1: #{tpu_custom_call.1} parent=0
    #allocation2 [shape = 'u8[8192]{0}', space=vmem, size = 0x2000, scoped, tag = 'input window, operand 0, single buffered']
    #allocation3 [shape = 's32[1]{0}', space=sflag, size = 0x4, scoped, tag = 'scoped memory for tpu_custom_call.1']
    #allocation4 [shape = 's32[1]{0}', space=sflag, size = 0x4, scoped, tag = 'scoped memory for tpu_custom_call.1']
    #allocation5 [shape = 'u8[8192]{0}', space=vmem, size = 0x2000, scoped, tag = 'output window, operand 0, single buffered']
    %6 = vsyncpa [#allocation3], 0
    %7 = vsyncpa [#allocation4], 0
    // Predicated region
    $region2: #{tpu_custom_call.1} parent=1 // pred_check
      _
    $region3: #{tpu_custom_call.1} parent=1 // pred_check_branch
      %9 = sbr.rel (0) target = $region5
    $region4: #{tpu_custom_call.1} parent=1 // pred_region
      %s11 = ssub.s32 256, 256
      %12 = vsyncadd [#allocation3], %s11
      %s14 = sshll.u32 [#allocation2], 4
      %s15 = int_to_ptr.vmem [resolvable:$true] %s14
      %17 = dma.hbm_to_vmem [thread:$0]  %s0, 256, %s15, [#allocation3]
    $region5: #{tpu_custom_call.1} parent=1 // pred_fallthru
      _
    // Predicated region
    $region6: #{tpu_custom_call.1} parent=1 // pred_check
      _
    $region7: #{tpu_custom_call.1} parent=1 // pred_check_branch
      %19 = sbr.rel (0) target = $region9
    $region8: #{tpu_custom_call.1} parent=1 // pred_region
      %20 = dma.done [#allocation3], 256
    $region9: #{tpu_custom_call.1} parent=1 // pred_fallthru
      _
    %v21 = vld [vmem:[#allocation2] sm:$0xff]
    %v22 = vld [vmem:[#allocation2 + $0x8] sm:$0xff]
    %v23 = vadd.f32 %v21, 3.0
    %v24 = vadd.f32 %v22, 3.0
    %v25 = vmax.f32 %v23, 0.0
    %v26 = vmax.f32 %v24, 0.0
    %v27 = vmin.f32 %v25, 6.0
    %v28 = vmin.f32 %v26, 6.0
    %v29 = vmul.f32 %v21, %v27
    %v30 = vmul.f32 %v22, %v28
    %v31 = vmul.f32 %v29, 0.16666667
    %v32 = vmul.f32 %v30, 0.16666667
    %33 = vst [vmem:[#allocation5] sm:$0xff] %v31
    %34 = vst [vmem:[#allocation5 + $0x8] sm:$0xff] %v32
    // Predicated region
    $region10: #{tpu_custom_call.1} parent=1 // pred_check
      _
    $region11: #{tpu_custom_call.1} parent=1 // pred_check_branch
      %36 = sbr.rel (0) target = $region13
    $region12: #{tpu_custom_call.1} parent=1 // pred_region
      %s38 = ssub.s32 256, 256
      %39 = vsyncadd [#allocation4], %s38
      %s41 = sshll.u32 [#allocation5], 4
      %s42 = int_to_ptr.vmem [resolvable:$true] %s41
      %44 = dma.vmem_to_hbm [thread:$0]  %s42, 256, %s1, [#allocation4]
    $region13: #{tpu_custom_call.1} parent=1 // pred_fallthru
      _
    // Predicated region
    $region14: #{tpu_custom_call.1} parent=1 // pred_check
      _
    $region15: #{tpu_custom_call.1} parent=1 // pred_check_branch
      %46 = sbr.rel (0) target = $region17
    $region16: #{tpu_custom_call.1} parent=1 // pred_region
      %47 = dma.done [#allocation4], 256
    $region17: #{tpu_custom_call.1} parent=1 // pred_fallthru
      _
    %48 = vsyncpa [#allocation3], 1
    %49 = vsyncpa [#allocation4], 1

</llo_original>
